<compile_context>
chip_gen: v7x
topology: tpu7x:2x2x1
jax: 0.10.0
libtpu: 0.0.40
codegen_flags: <defaults>
</compile_context>

<pallas_src>
import jax
import jax.numpy as jnp
from jax.experimental import pallas as pl
from jax.experimental.pallas import tpu as pltpu

_EPS = 1e-12            # F.normalize default eps (clamp on the norm)
_EPS_SQ = _EPS * _EPS   # clamp on the sum of squares (1e-24; normal f32)

_LANE = 128
_SUBLANE = 8
_TARGET_BLOCK_BYTES = 2 * 1024 * 1024   # ~2 MiB blocks pipeline well on v5e/v6e/v7x
_MAX_LANE_TILE = 16 * 1024              # raised from 2048 per perf review
_MAX_ROW_TILE = 2048                    # raised from 256 per perf review
_VMEM_LIMIT_BYTES = 32 * 1024 * 1024    # covers v5e's 16 MiB scoped default; OK on v7x


def _round_up(x, m):
    return -(-x // m) * m


def _cdiv(a, b):
    return -(-a // b)


def _sublane_pack(itemsize):
    # Physical sublane packing: f32 -> 8, bf16/f16 -> 16, int8/fp8 -> 32.
    return _SUBLANE * max(1, 4 // int(itemsize))


# ---------------------------------------------------------------------------
# Kernels.  NOTE: the reduction axis is always a *full* (untiled) block dim.
# ---------------------------------------------------------------------------
def _l2n_kernel_reduce_sublanes(x_ref, o_ref):
    """Block (C, T_HW): channels on sublanes, flattened spatial on lanes."""
    xf = x_ref[...].astype(jnp.float32)
    ssq = jnp.sum(xf * xf, axis=0, keepdims=True)          # (1, T_HW) f32
    inv = jax.lax.rsqrt(jnp.maximum(ssq, _EPS_SQ))          # == 1 / max(||x||, eps)
    o_ref[...] = (xf * inv).astype(o_ref.dtype)


def _l2n_kernel_reduce_axis1(x_ref, o_ref):
    """Block (T_B, C, HW): several batch items per block, reduce over channels."""
    xf = x_ref[...].astype(jnp.float32)
    ssq = jnp.sum(xf * xf, axis=1, keepdims=True)           # (T_B, 1, HW) f32
    inv = jax.lax.rsqrt(jnp.maximum(ssq, _EPS_SQ))
    o_ref[...] = (xf * inv).astype(o_ref.dtype)


def _l2n_kernel_reduce_lanes(x_ref, o_ref):
    """Block (T_N, C): rows on sublanes, lane-dense features; reduce over lanes."""
    xf = x_ref[...].astype(jnp.float32)
    ssq = jnp.sum(xf * xf, axis=-1, keepdims=True)          # (T_N, 1) f32
    inv = jax.lax.rsqrt(jnp.maximum(ssq, _EPS_SQ))
    o_ref[...] = (xf * inv).astype(o_ref.dtype)


# ---------------------------------------------------------------------------
# Wrappers
# ---------------------------------------------------------------------------
def _l2_normalize_channels(x, block_bytes):
    """dim=1 normalize for (N, C, *spatial) inputs."""
    orig_shape = x.shape
    n, c = x.shape[0], x.shape[1]
    xr = x.reshape(n, c, -1)
    hw = xr.shape[-1]
    itemsize = jnp.dtype(x.dtype).itemsize

    # Honest VMEM footprint of one batch item: sublane-padded C x lane-padded HW.
    c_pad = _round_up(c, _sublane_pack(itemsize))
    hw_lane = _round_up(hw, _LANE)
    per_item_bytes = c_pad * hw_lane * itemsize

    if per_item_bytes <= block_bytes:
        # --- Small feature map: fold batch items into the block. -----------
        tile_b = max(1, min(block_bytes // per_item_bytes, n))
        if n >= 8:
            # Keep >= ~8 grid steps so the pipeline (and both v7x TCs) have work.
            tile_b = min(tile_b, _cdiv(n, 8))
        grid = (_cdiv(n, tile_b),)
        out = pl.pallas_call(
            _l2n_kernel_reduce_axis1,
            out_shape=jax.ShapeDtypeStruct((n, c, hw), x.dtype),
            grid_spec=pltpu.PrefetchScalarGridSpec(
                num_scalar_prefetch=0,
                grid=grid,
                # Last two block dims equal the full array dims -> always legal.
                in_specs=[pl.BlockSpec((tile_b, c, hw), lambda i: (i, 0, 0))],
                out_specs=pl.BlockSpec((tile_b, c, hw), lambda i: (i, 0, 0)),
            ),
            compiler_params=pltpu.CompilerParams(
                dimension_semantics=("parallel",),
                vmem_limit_bytes=_VMEM_LIMIT_BYTES,
            ),
        )(xr)
    else:
        # --- Large per-item footprint: tile HW into lane-dense blocks. -----
        tile = block_bytes // max(c_pad * itemsize, 1)
        tile = max(_LANE, (tile // _LANE) * _LANE)
        tile = min(tile, _MAX_LANE_TILE)
        if tile >= hw:
            tile = hw          # full dim is always a legal last block dim
        grid = (n, _cdiv(hw, tile))
        # TODO(synk): for pathological C (block c*128*itemsize > ~8 MiB) a
        # two-pass (norm then scale) kernel would be needed; not expected here.
        out = pl.pallas_call(
            _l2n_kernel_reduce_sublanes,
            out_shape=jax.ShapeDtypeStruct((n, c, hw), x.dtype),
            grid_spec=pltpu.PrefetchScalarGridSpec(
                num_scalar_prefetch=0,
                grid=grid,
                in_specs=[pl.BlockSpec((pl.Squeezed(), c, tile),
                                       lambda i, j: (i, 0, j))],
                out_specs=pl.BlockSpec((pl.Squeezed(), c, tile),
                                       lambda i, j: (i, 0, j)),
            ),
            compiler_params=pltpu.CompilerParams(
                dimension_semantics=("parallel", "parallel"),
                vmem_limit_bytes=_VMEM_LIMIT_BYTES,
            ),
        )(xr)

    return out.reshape(orig_shape)


def _l2_normalize_rows(x, block_bytes):
    """dim=1 normalize for (N, C) inputs: C stays lane-dense."""
    n, c = x.shape
    itemsize = jnp.dtype(x.dtype).itemsize
    c_lanes = _round_up(c, _LANE)   # physical lane footprint per row

    tile_n = block_bytes // max(c_lanes * itemsize, 1)
    tile_n = max(_SUBLANE, (tile_n // _SUBLANE) * _SUBLANE)
    tile_n = min(tile_n, _MAX_ROW_TILE)
    if n >= 8 * _SUBLANE:
        # Keep >= ~8 grid steps for pipelining / both v7x TensorCores.
        tile_n = min(tile_n, _round_up(_cdiv(n, 8), _SUBLANE))
    if tile_n >= n:
        tile_n = n             # full dim is always a legal block dim
    grid = (_cdiv(n, tile_n),)

    # NOTE(v5e): for C < 128 the store is lane-sparse (vst.msk); acceptable
    # while HBM-bound, revisit only if the single v5e vst slot saturates.
    return pl.pallas_call(
        _l2n_kernel_reduce_lanes,
        out_shape=jax.ShapeDtypeStruct((n, c), x.dtype),
        grid_spec=pltpu.PrefetchScalarGridSpec(
            num_scalar_prefetch=0,
            grid=grid,
            in_specs=[pl.BlockSpec((tile_n, c), lambda i: (i, 0))],
            out_specs=pl.BlockSpec((tile_n, c), lambda i: (i, 0)),
        ),
        compiler_params=pltpu.CompilerParams(
            dimension_semantics=("parallel",),
            vmem_limit_bytes=_VMEM_LIMIT_BYTES,
        ),
    )(x)


def l2_normalize(x, *, block_bytes=_TARGET_BLOCK_BYTES):
    """F.normalize(x, p=2, dim=1) for (N, C) or (N, C, *spatial) inputs."""
    if x.ndim < 2:
        raise ValueError("L2Normalize(dim=1) needs an input with >= 2 dims.")
    if x.ndim == 2:
        return _l2_normalize_rows(x, block_bytes)
    return _l2_normalize_channels(x, block_bytes)


# ---------------------------------------------------------------------------
# Self-test
# ---------------------------------------------------------------------------
def _ref_normalize(x, dim=1):
    xf = x.astype(jnp.float32)
    ssq = jnp.sum(xf * xf, axis=dim, keepdims=True)
    denom = jnp.maximum(jnp.sqrt(ssq), _EPS)
    return (xf / denom).astype(x.dtype)


if __name__ == "__main__":
    key = jax.random.PRNGKey(0)
    k1, k2, k3, k4, k5, k6 = jax.random.split(key, 6)

    # 1) NCHW input -> batch-folded channel path.
    x_nchw = jax.random.normal(k1, (2, 4, 16, 16), dtype=jnp.float32)
    y_nchw = jax.block_until_ready(l2_normalize(x_nchw))
    assert jnp.allclose(y_nchw, _ref_normalize(x_nchw), atol=1e-5, rtol=1e-5)

    # 2) NCHW input with HW not a multiple of 128 and C=3.
    x_odd = jax.random.normal(k2, (2, 3, 10, 10), dtype=jnp.float32)
    y_odd = jax.block_until_ready(l2_normalize(x_odd))
    assert jnp.allclose(y_odd, _ref_normalize(x_odd), atol=1e-5, rtol=1e-5)

    # 3) 2-D (N, C) embedding-style input (lane-dense C path).
    x_2d = jax.random.normal(k3, (8, 32), dtype=jnp.float32)
    y_2d = jax.block_until_ready(l2_normalize(x_2d))
    assert jnp.allclose(y_2d, _ref_normalize(x_2d), atol=1e-5, rtol=1e-5)

    # 4) Force the HW-tiled path with a masked partial edge block.
    x_tiled = jax.random.normal(k4, (2, 4, 24, 24), dtype=jnp.float32)
    y_tiled = jax.block_until_ready(l2_normalize(x_tiled, block_bytes=16 * 1024))
    assert jnp.allclose(y_tiled, _ref_normalize(x_tiled), atol=1e-5, rtol=1e-5)

    # 5) Row path with a masked partial edge block (n=10 not a multiple of 8).
    x_rows = jax.random.normal(k5, (10, 32), dtype=jnp.float32)
    y_rows = jax.block_until_ready(l2_normalize(x_rows, block_bytes=2048))
    assert jnp.allclose(y_rows, _ref_normalize(x_rows), atol=1e-5, rtol=1e-5)

    # 6) bf16 NCHW input (f32 accumulation + single cast on store).
    x_bf16 = jax.random.normal(k6, (4, 8, 12, 12), dtype=jnp.bfloat16)
    y_bf16 = jax.block_until_ready(l2_normalize(x_bf16))
    assert jnp.allclose(y_bf16.astype(jnp.float32),
                        _ref_normalize(x_bf16).astype(jnp.float32),
                        atol=2e-2, rtol=2e-2)

    print("KERNEL_OK")
</pallas_src>

<mosaic_0001>
module attributes {stable_mosaic.version = 11 : i64} {
  func.func @_l2n_kernel_reduce_axis1(%arg0: i32, %arg1: memref<2x4x256xf32, #tpu.memory_space<vmem>>, %arg2: memref<2x4x256xf32, #tpu.memory_space<vmem>>) attributes {dimension_semantics = [#tpu.dimension_semantics<parallel>], iteration_bounds = array<i64: 1>, scalar_prefetch = 0 : i64, scratch_operands = 0 : i64, tpu.core_type = #tpu.core_type<tc>, window_params = [{transform_indices = @transform_0, window_bounds = array<i64: 2, 4, 256>}, {transform_indices = @transform_1, window_bounds = array<i64: 2, 4, 256>}]} {
    %c0 = arith.constant 0 : index
    %c0_0 = arith.constant 0 : index
    %c0_1 = arith.constant 0 : index
    %0 = vector.load %arg1[%c0, %c0_0, %c0_1] : memref<2x4x256xf32, #tpu.memory_space<vmem>>, vector<2x4x256xf32>
    %1 = arith.mulf %0, %0 : vector<2x4x256xf32>
    %cst = arith.constant dense<0.000000e+00> : vector<2x256xf32>
    %2 = vector.multi_reduction <add>, %1, %cst [1] : vector<2x4x256xf32> to vector<2x256xf32>
    %3 = vector.shape_cast %2 : vector<2x256xf32> to vector<2x1x256xf32>
    %cst_2 = arith.constant 1.000000e-24 : f32
    %4 = vector.broadcast %cst_2 : f32 to vector<2x1x256xf32>
    %5 = arith.maximumf %3, %4 : vector<2x1x256xf32>
    %6 = math.rsqrt %5 : vector<2x1x256xf32>
    %7 = vector.broadcast %6 : vector<2x1x256xf32> to vector<2x4x256xf32>
    %8 = arith.mulf %0, %7 : vector<2x4x256xf32>
    %c0_3 = arith.constant 0 : index
    %c0_4 = arith.constant 0 : index
    %c0_5 = arith.constant 0 : index
    %9 = vector.load %arg2[%c0_3, %c0_4, %c0_5] : memref<2x4x256xf32, #tpu.memory_space<vmem>>, vector<2x4x256xf32>
    tpu.vector_store %arg2[%c0_3, %c0_4, %c0_5], %8 {strides = array<i32>} : memref<2x4x256xf32, #tpu.memory_space<vmem>>, vector<2x4x256xf32>,
    return
  }
  func.func @transform_0(%arg0: i32) -> (i32, i32, i32) {
    %c0_i32 = arith.constant 0 : i32
    %c0_i32_0 = arith.constant 0 : i32
    %c0_i32_1 = arith.constant 0 : i32
    return %arg0, %c0_i32, %c0_i32_0 : i32, i32, i32
  }
  func.func @transform_1(%arg0: i32) -> (i32, i32, i32) {
    %c0_i32 = arith.constant 0 : i32
    %c0_i32_0 = arith.constant 0 : i32
    %c0_i32_1 = arith.constant 0 : i32
    return %arg0, %c0_i32, %c0_i32_0 : i32, i32, i32
  }
}

</mosaic_0001>

<llo_original>
// kernel: tpu_custom_call.1
$region0: #{tpu_custom_call.1}
  #allocation0 [shape = 'u32[]', space=smem, size = 0x4, offset = 0x4, fixed_abs, tag = 'smem constant byte address 0x4 - core index']
  #allocation1 [shape = 'u32[144,128]{1,0:T(1,128)}', space=vmem, size = 0x12000, scoped, tag = 'internal scratch']
  %s0 = inlined_call_operand.hbm [shape: f32[2,4,256], index: 0, kind: input, shape index: {}]
  %s1 = inlined_call_operand.hbm [shape: f32[2,4,256], index: 1, kind: output, shape index: {}]
  %s2 = sld [smem:[#allocation0]]
  $region18: #{tpu_custom_call.1} parent=0
    _
  %s4 = ssub.s32 1, %s2
  %s5 = scalar_select 0, %s4, %s2
  $region1: #{tpu_custom_call.1} parent=0
    #allocation2 [shape = 'u8[8192]{0}', space=vmem, size = 0x2000, scoped, tag = 'input window, operand 0, single buffered']
    #allocation3 [shape = 's32[1]{0}', space=sflag, size = 0x4, scoped, tag = 'scoped memory for tpu_custom_call.1']
    #allocation4 [shape = 's32[1]{0}', space=sflag, size = 0x4, scoped, tag = 'scoped memory for tpu_custom_call.1']
    #allocation5 [shape = 'u8[8192]{0}', space=vmem, size = 0x2000, scoped, tag = 'output window, operand 0, single buffered']
    %6 = vsyncpa [#allocation3], 0
    %7 = vsyncpa [#allocation4], 0
    // Predicated region
    $region2: #{tpu_custom_call.1} parent=1 // pred_check
      _
    $region3: #{tpu_custom_call.1} parent=1 // pred_check_branch
      %9 = sbr.rel (0) target = $region5
    $region4: #{tpu_custom_call.1} parent=1 // pred_region
      %s11 = ssub.s32 256, 256
      %12 = vsyncadd [#allocation3], %s11
      %s13 = sshll.u32 [#allocation2], 4
      %s14 = int_to_ptr.vmem [resolvable:$true] %s13
      %19 = dma.hbm_to_vmem [thread:$0]  %s0, 256, %s14, [#allocation3], 128, 128, 8
    $region5: #{tpu_custom_call.1} parent=1 // pred_fallthru
      _
    // Predicated region
    $region6: #{tpu_custom_call.1} parent=1 // pred_check
      _
    $region7: #{tpu_custom_call.1} parent=1 // pred_check_branch
      %21 = sbr.rel (0) target = $region9
    $region8: #{tpu_custom_call.1} parent=1 // pred_region
      %22 = dma.done [#allocation3], 256
    $region9: #{tpu_custom_call.1} parent=1 // pred_fallthru
      _
    %v23 = vld [vmem:[#allocation2] sm:$0xff]
    %v24 = vld [vmem:[#allocation2 + $0x8] sm:$0xff]
    %v25 = vmul.f32 %v23, %v23
    %v26 = vmul.f32 %v24, %v24
    %v29 = vcombine.high %v25, %v25
    %v30 = vcombine.high %v26, %v26
    %vm33 = vcmask 1043456
    %v34 = vsel %vm33, %v25, 0.0
    %v35 = vrot.slane %v34, 4
    %v36 = vadd.f32 %v34, %v35
    %v37 = vrot.slane %v36, 2
    %v38 = vadd.f32 %v36, %v37
    %v39 = vrot.slane %v38, 1
    %v40 = vadd.f32 %v38, %v39
    %v41 = vsel %vm33, %v29, 0.0
    %v42 = vrot.slane %v41, 4
    %v43 = vadd.f32 %v41, %v42
    %v44 = vrot.slane %v43, 2
    %v45 = vadd.f32 %v43, %v44
    %v46 = vrot.slane %v45, 1
    %v47 = vadd.f32 %v45, %v46
    %v48 = vsel %vm33, %v26, 0.0
    %v49 = vrot.slane %v48, 4
    %v50 = vadd.f32 %v48, %v49
    %v51 = vrot.slane %v50, 2
    %v52 = vadd.f32 %v50, %v51
    %v53 = vrot.slane %v52, 1
    %v54 = vadd.f32 %v52, %v53
    %v55 = vsel %vm33, %v30, 0.0
    %v56 = vrot.slane %v55, 4
    %v57 = vadd.f32 %v55, %v56
    %v58 = vrot.slane %v57, 2
    %v59 = vadd.f32 %v57, %v58
    %v60 = vrot.slane %v59, 1
    %v61 = vadd.f32 %v59, %v60
    %v62 = vmax.f32 %v40, 1e-24
    %v63 = vmax.f32 %v47, 1e-24
    %v64 = vmax.f32 %v54, 1e-24
    %v65 = vmax.f32 %v61, 1e-24
    %v66 = vrsqrt.pop %v62
    %v67 = vrsqrt.pop %v63
    %v68 = vrsqrt.pop %v64
    %v69 = vrsqrt.pop %v65
    %v74 = vcombine.low %v66, %v67
    %v75 = vcombine.low %v68, %v69
    %v78 = vmul.f32 %v23, %v74
    %v79 = vmul.f32 %v24, %v75
    %80 = vst [vmem:[#allocation5] sm:$0xff] %v78
    %81 = vst [vmem:[#allocation5 + $0x8] sm:$0xff] %v79
    // Predicated region
    $region10: #{tpu_custom_call.1} parent=1 // pred_check
      _
    $region11: #{tpu_custom_call.1} parent=1 // pred_check_branch
      %83 = sbr.rel (0) target = $region13
    $region12: #{tpu_custom_call.1} parent=1 // pred_region
      %s85 = ssub.s32 256, 256
      %86 = vsyncadd [#allocation4], %s85
      %s87 = sshll.u32 [#allocation5], 4
      %s88 = int_to_ptr.vmem [resolvable:$true] %s87
      %93 = dma.vmem_to_hbm [thread:$0]  %s88, 256, %s1, [#allocation4], 128, 128, 8
    $region13: #{tpu_custom_call.1} parent=1 // pred_fallthru
      _
    // Predicated region
    $region14: #{tpu_custom_call.1} parent=1 // pred_check
      _
    $region15: #{tpu_custom_call.1} parent=1 // pred_check_branch
      %95 = sbr.rel (0) target = $region17
    $region16: #{tpu_custom_call.1} parent=1 // pred_region
      %96 = dma.done [#allocation4], 256
    $region17: #{tpu_custom_call.1} parent=1 // pred_fallthru
      _
    %97 = vsyncpa [#allocation3], 1
    %98 = vsyncpa [#allocation4], 1

</llo_original>
